<compile_context>
chip_gen: v5e
topology: v5e:2x2
jax: 0.10.0
libtpu: 0.0.40
codegen_flags: <defaults>
</compile_context>

<pallas_src>
import jax
import jax.numpy as jnp
from jax.experimental import pallas as pl
from jax.experimental.pallas import tpu as pltpu

LANE = 128          # TPU lane width; padded width for all sub-128 feature dims.
H1, H2 = 256, 128   # first two hidden widths (already lane-aligned).
TILE_B = 256        # batch tile: multiple of 8, well under the 1024 ceiling that keeps
                    # activations + weights far below v7x's 64 MiB VMEM.


def _round_up(x, m):
    return ((x + m - 1) // m) * m


def _pad_cols(x, n):
    return x if x.shape[1] == n else jnp.pad(x, ((0, 0), (0, n - x.shape[1])))


# ---------------------------------------------------------------------------
# Kernel
# ---------------------------------------------------------------------------
def actor_kernel(state_ref, sensor_ref, w1_ref, w2_ref, w5x_ref, wp_ref, bp_ref, out_ref):
    """One batch tile of the Actor forward pass.

    wp_ref: (5, 128, 128) packed small weights [w3, w4, w5s, w6, w7], zero-padded.
    bp_ref: (8, 256)  f32 packed biases, row r = bias of layer r+1, zero-padded.
    """
    f32 = jnp.float32
    cdt = w1_ref.dtype            # MXU operand dtype (bf16 weights -> bf16 operands)
    bp = bp_ref[...]

    def bias(r, n):
        return bp[r:r + 1, :n]    # (1, n) f32, broadcasts over the batch tile

    def dense(x, w, b):
        return jnp.maximum(
            jnp.dot(x.astype(cdt), w, preferred_element_type=f32) + b, 0.0)

    # sensor_model: 4 x (Linear + ReLU)
    h = dense(sensor_ref[...], w1_ref[...], bias(0, H1))      # (TB, 256)
    h = dense(h, w2_ref[...], bias(1, H2))                    # (TB, 128)
    h = dense(h, wp_ref[0], bias(2, LANE))                    # (TB, 128), real width 64
    s = dense(h, wp_ref[1], bias(3, LANE))                    # (TB, 128), real width 32

    # state_model layer 1 on concat([sensor_out, state], 1); concat folded into two dots.
    g = (jnp.dot(s.astype(cdt), wp_ref[2], preferred_element_type=f32)
         + jnp.dot(state_ref[...].astype(cdt), w5x_ref[...], preferred_element_type=f32)
         + bias(4, LANE))
    g = jnp.maximum(g, 0.0)                                   # (TB, 128), real width 64
    g = dense(g, wp_ref[3], bias(5, LANE))                    # (TB, 128), real width 32

    # state_model layer 3: Linear + Tanh, lane-dense (TB, 128) store.
    out_ref[...] = jnp.tanh(
        jnp.dot(g.astype(cdt), wp_ref[4], preferred_element_type=f32) + bias(6, LANE))


# ---------------------------------------------------------------------------
# Wrapper
# ---------------------------------------------------------------------------
def actor_forward(state, sensor, packed):
    """Actor forward pass. Returns (B, action_dim) f32 actions in [-1, 1]."""
    w1, w2, w5x = packed["w1"], packed["w2"], packed["w5x"]
    wpack, bpack = packed["wpack"], packed["bpack"]
    action_dim = packed["action_dim"]

    B = state.shape[0]
    sensor_pad = w1.shape[0]
    state_pad = w5x.shape[0]

    # Zero-pad the K dims to match the padded weight row counts (exact: pad rows are 0).
    state_p = _pad_cols(state.astype(jnp.float32), state_pad)
    sensor_p = _pad_cols(sensor.astype(jnp.float32), sensor_pad)

    tb = B if B <= TILE_B else TILE_B
    grid = (pl.cdiv(B, tb),)

    out = pl.pallas_call(
        actor_kernel,
        out_shape=jax.ShapeDtypeStruct((B, LANE), jnp.float32),
        grid=grid,
        in_specs=[
            # Activations: blocked over the batch axis.
            pl.BlockSpec((tb, state_pad), lambda i: (i, 0)),
            pl.BlockSpec((tb, sensor_pad), lambda i: (i, 0)),
            # Weights / biases: constant index maps -> fetched once, VMEM-resident.
            pl.BlockSpec(w1.shape, lambda i: (0, 0)),
            pl.BlockSpec(w2.shape, lambda i: (0, 0)),
            pl.BlockSpec(w5x.shape, lambda i: (0, 0)),
            pl.BlockSpec(wpack.shape, lambda i: (0, 0, 0)),
            pl.BlockSpec(bpack.shape, lambda i: (0, 0)),
        ],
        out_specs=pl.BlockSpec((tb, LANE), lambda i: (i, 0)),
        compiler_params=pltpu.CompilerParams(
            dimension_semantics=("parallel",),   # shard batch tiles across v7x's 2 TCs
        ),
    )(state_p, sensor_p, w1, w2, w5x, wpack, bpack)

    return out[:, :action_dim]


# ---------------------------------------------------------------------------
# Parameter init (matches the PyTorch module) and packing into kernel layout
# ---------------------------------------------------------------------------
def _xavier_uniform(key, fan_in, fan_out):
    bound = (6.0 / (fan_in + fan_out)) ** 0.5
    return jax.random.uniform(key, (fan_in, fan_out), jnp.float32, -bound, bound)


def _bias(key, fan_in, fan_out):
    # PyTorch Linear default bias init: U(-1/sqrt(fan_in), 1/sqrt(fan_in)).
    bound = 1.0 / (fan_in ** 0.5)
    return jax.random.uniform(key, (fan_out,), jnp.float32, -bound, bound)


def init_actor_params(key, state_dim, sensor_dim, action_dim):
    keys = jax.random.split(key, 16)
    p = {}
    # sensor_model
    p["w1"] = _xavier_uniform(keys[0], sensor_dim, 256); p["b1"] = _bias(keys[1], sensor_dim, 256)
    p["w2"] = _xavier_uniform(keys[2], 256, 128);        p["b2"] = _bias(keys[3], 256, 128)
    p["w3"] = _xavier_uniform(keys[4], 128, 64);         p["b3"] = _bias(keys[5], 128, 64)
    p["w4"] = _xavier_uniform(keys[6], 64, 32);          p["b4"] = _bias(keys[7], 64, 32)
    # state_model layer 1: input is concat([sensor_out(32), state(state_dim)])
    w5 = _xavier_uniform(keys[8], 32 + state_dim, 64)
    p["w5s"] = w5[:32, :]          # rows that multiply sensor_out
    p["w5x"] = w5[32:, :]          # rows that multiply state
    p["b5"] = _bias(keys[9], 32 + state_dim, 64)
    p["w6"] = _xavier_uniform(keys[10], 64, 32);         p["b6"] = _bias(keys[11], 64, 32)
    p["w7"] = _xavier_uniform(keys[12], 32, action_dim); p["b7"] = _bias(keys[13], 32, action_dim)
    # TODO(synk): action_layer_x / action_layer_z are defined in __init__ but unused in
    # forward(), so they are intentionally not implemented.
    return p


def pack_actor_params(p, weight_dtype=jnp.bfloat16):
    """Pads/packs the logical f32 params into the kernel's operand layout."""
    def padw(w, rows, cols):
        w = jnp.asarray(w, jnp.float32)
        return jnp.zeros((rows, cols), jnp.float32).at[:w.shape[0], :w.shape[1]].set(w)

    def padb(b):
        b = jnp.asarray(b, jnp.float32).reshape(-1)
        return jnp.pad(b, (0, H1 - b.shape[0]))

    sensor_dim = p["w1"].shape[0]
    state_dim = p["w5x"].shape[0]
    action_dim = p["w7"].shape[1]
    sensor_pad = _round_up(sensor_dim, 16)
    state_pad = _round_up(state_dim, 16)

    w1 = padw(p["w1"], sensor_pad, H1).astype(weight_dtype)
    w2 = jnp.asarray(p["w2"], jnp.float32).astype(weight_dtype)
    w5x = padw(p["w5x"], state_pad, LANE).astype(weight_dtype)
    wpack = jnp.stack([
        padw(p["w3"], H2, LANE),
        padw(p["w4"], LANE, LANE),
        padw(p["w5s"], LANE, LANE),
        padw(p["w6"], LANE, LANE),
        padw(p["w7"], LANE, LANE),
    ]).astype(weight_dtype)
    bpack = jnp.stack([padb(p["b1"]), padb(p["b2"]), padb(p["b3"]), padb(p["b4"]),
                       padb(p["b5"]), padb(p["b6"]), padb(p["b7"]),
                       jnp.zeros((H1,), jnp.float32)])
    return {"w1": w1, "w2": w2, "w5x": w5x, "wpack": wpack, "bpack": bpack,
            "action_dim": action_dim}


# ---------------------------------------------------------------------------
# Pure-JAX reference (same bf16 weight rounding) for a sanity check
# ---------------------------------------------------------------------------
def actor_reference(state, sensor, p, weight_dtype=jnp.bfloat16):
    f32 = jnp.float32
    def lin(x, w, b, act):
        w = jnp.asarray(w, f32).astype(weight_dtype)
        y = jnp.dot(x.astype(weight_dtype), w, preferred_element_type=f32) + b
        return act(y)
    relu = lambda v: jnp.maximum(v, 0.0)
    h = lin(sensor, p["w1"], p["b1"], relu)
    h = lin(h, p["w2"], p["b2"], relu)
    h = lin(h, p["w3"], p["b3"], relu)
    s = lin(h, p["w4"], p["b4"], relu)
    combine = jnp.concatenate([s, state], axis=1)
    w5 = jnp.concatenate([p["w5s"], p["w5x"]], axis=0)
    g = lin(combine, w5, p["b5"], relu)
    g = lin(g, p["w6"], p["b6"], relu)
    return lin(g, p["w7"], p["b7"], jnp.tanh)


if __name__ == "__main__":
    B, state_dim, sensor_dim, action_dim = 2, 8, 16, 2

    key = jax.random.PRNGKey(0)
    k_state, k_sensor, k_params = jax.random.split(key, 3)
    state = jax.random.normal(k_state, (B, state_dim), jnp.float32)
    sensor = jax.random.normal(k_sensor, (B, sensor_dim), jnp.float32)

    params = init_actor_params(k_params, state_dim, sensor_dim, action_dim)
    packed = pack_actor_params(params)

    out = actor_forward(state, sensor, packed)
    jax.block_until_ready(out)

    assert out.shape == (B, action_dim)
    assert bool(jnp.all(jnp.isfinite(out)))
    ref = actor_reference(state, sensor, params)
    max_err = float(jnp.max(jnp.abs(out - ref)))
    assert max_err < 5e-2, f"max abs err {max_err}"
    print("KERNEL_OK")
</pallas_src>

<mosaic_0001>
module attributes {stable_mosaic.version = 11 : i64} {
  func.func @actor_kernel(%arg0: i32, %arg1: memref<2x16xf32, #tpu.memory_space<vmem>>, %arg2: memref<2x16xf32, #tpu.memory_space<vmem>>, %arg3: memref<16x256xbf16, #tpu.memory_space<vmem>>, %arg4: memref<256x128xbf16, #tpu.memory_space<vmem>>, %arg5: memref<16x128xbf16, #tpu.memory_space<vmem>>, %arg6: memref<5x128x128xbf16, #tpu.memory_space<vmem>>, %arg7: memref<8x256xf32, #tpu.memory_space<vmem>>, %arg8: memref<2x128xf32, #tpu.memory_space<vmem>>) attributes {dimension_semantics = [#tpu.dimension_semantics<parallel>], iteration_bounds = array<i64: 1>, scalar_prefetch = 0 : i64, scratch_operands = 0 : i64, tpu.core_type = #tpu.core_type<tc>, window_params = [{transform_indices = @transform_0, window_bounds = array<i64: 2, 16>}, {transform_indices = @transform_1, window_bounds = array<i64: 2, 16>}, {pipeline_mode = #tpu.pipeline_mode<synchronous>, transform_indices = @transform_2, window_bounds = array<i64: 16, 256>}, {pipeline_mode = #tpu.pipeline_mode<synchronous>, transform_indices = @transform_3, window_bounds = array<i64: 256, 128>}, {pipeline_mode = #tpu.pipeline_mode<synchronous>, transform_indices = @transform_4, window_bounds = array<i64: 16, 128>}, {pipeline_mode = #tpu.pipeline_mode<synchronous>, transform_indices = @transform_5, window_bounds = array<i64: 5, 128, 128>}, {pipeline_mode = #tpu.pipeline_mode<synchronous>, transform_indices = @transform_6, window_bounds = array<i64: 8, 256>}, {transform_indices = @transform_7, window_bounds = array<i64: 2, 128>}]} {
    %c0 = arith.constant 0 : index
    %c0_0 = arith.constant 0 : index
    %0 = vector.load %arg7[%c0, %c0_0] : memref<8x256xf32, #tpu.memory_space<vmem>>, vector<8x256xf32>
    %c0_1 = arith.constant 0 : index
    %c0_2 = arith.constant 0 : index
    %1 = vector.load %arg2[%c0_1, %c0_2] : memref<2x16xf32, #tpu.memory_space<vmem>>, vector<2x16xf32>
    %c0_3 = arith.constant 0 : index
    %c0_4 = arith.constant 0 : index
    %2 = vector.load %arg3[%c0_3, %c0_4] : memref<16x256xbf16, #tpu.memory_space<vmem>>, vector<16x256xbf16>
    %3 = vector.extract_strided_slice %0 {offsets = [0, 0], sizes = [1, 256], strides = [1, 1]} : vector<8x256xf32> to vector<1x256xf32>
    %4 = arith.truncf %1 : vector<2x16xf32> to vector<2x16xbf16>
    %cst = arith.constant dense<0.000000e+00> : vector<2x256xf32>
    %5 = tpu.matmul %4, %2, %cst {dimension_numbers = #tpu.dot_dimension_numbers<[1], [0], [0], [1], [0, 0, 1, 1], [], []>} : vector<2x16xbf16>, vector<16x256xbf16>, vector<2x256xf32> -> vector<2x256xf32>
    %6 = vector.broadcast %3 : vector<1x256xf32> to vector<2x256xf32>
    %7 = arith.addf %5, %6 : vector<2x256xf32>
    %cst_5 = arith.constant 0.000000e+00 : f32
    %8 = vector.broadcast %cst_5 : f32 to vector<2x256xf32>
    %9 = arith.maximumf %7, %8 : vector<2x256xf32>
    %c0_6 = arith.constant 0 : index
    %c0_7 = arith.constant 0 : index
    %10 = vector.load %arg4[%c0_6, %c0_7] : memref<256x128xbf16, #tpu.memory_space<vmem>>, vector<256x128xbf16>
    %11 = vector.extract_strided_slice %0 {offsets = [1, 0], sizes = [1, 128], strides = [1, 1]} : vector<8x256xf32> to vector<1x128xf32>
    %12 = arith.truncf %9 : vector<2x256xf32> to vector<2x256xbf16>
    %cst_8 = arith.constant dense<0.000000e+00> : vector<2x128xf32>
    %13 = tpu.matmul %12, %10, %cst_8 {dimension_numbers = #tpu.dot_dimension_numbers<[1], [0], [0], [1], [0, 0, 1, 1], [], []>} : vector<2x256xbf16>, vector<256x128xbf16>, vector<2x128xf32> -> vector<2x128xf32>
    %14 = vector.broadcast %11 : vector<1x128xf32> to vector<2x128xf32>
    %15 = arith.addf %13, %14 : vector<2x128xf32>
    %cst_9 = arith.constant 0.000000e+00 : f32
    %16 = vector.broadcast %cst_9 : f32 to vector<2x128xf32>
    %17 = arith.maximumf %15, %16 : vector<2x128xf32>
    %c0_10 = arith.constant 0 : index
    %c0_11 = arith.constant 0 : index
    %c0_12 = arith.constant 0 : index
    %18 = vector.load %arg6[%c0_10, %c0_11, %c0_12] : memref<5x128x128xbf16, #tpu.memory_space<vmem>>, vector<1x128x128xbf16>
    %19 = vector.shape_cast %18 : vector<1x128x128xbf16> to vector<128x128xbf16>
    %20 = vector.extract_strided_slice %0 {offsets = [2, 0], sizes = [1, 128], strides = [1, 1]} : vector<8x256xf32> to vector<1x128xf32>
    %21 = arith.truncf %17 : vector<2x128xf32> to vector<2x128xbf16>
    %cst_13 = arith.constant dense<0.000000e+00> : vector<2x128xf32>
    %22 = tpu.matmul %21, %19, %cst_13 {dimension_numbers = #tpu.dot_dimension_numbers<[1], [0], [0], [1], [0, 0, 1, 1], [], []>} : vector<2x128xbf16>, vector<128x128xbf16>, vector<2x128xf32> -> vector<2x128xf32>
    %23 = vector.broadcast %20 : vector<1x128xf32> to vector<2x128xf32>
    %24 = arith.addf %22, %23 : vector<2x128xf32>
    %cst_14 = arith.constant 0.000000e+00 : f32
    %25 = vector.broadcast %cst_14 : f32 to vector<2x128xf32>
    %26 = arith.maximumf %24, %25 : vector<2x128xf32>
    %c1 = arith.constant 1 : index
    %c0_15 = arith.constant 0 : index
    %c0_16 = arith.constant 0 : index
    %27 = vector.load %arg6[%c1, %c0_15, %c0_16] : memref<5x128x128xbf16, #tpu.memory_space<vmem>>, vector<1x128x128xbf16>
    %28 = vector.shape_cast %27 : vector<1x128x128xbf16> to vector<128x128xbf16>
    %29 = vector.extract_strided_slice %0 {offsets = [3, 0], sizes = [1, 128], strides = [1, 1]} : vector<8x256xf32> to vector<1x128xf32>
    %30 = arith.truncf %26 : vector<2x128xf32> to vector<2x128xbf16>
    %cst_17 = arith.constant dense<0.000000e+00> : vector<2x128xf32>
    %31 = tpu.matmul %30, %28, %cst_17 {dimension_numbers = #tpu.dot_dimension_numbers<[1], [0], [0], [1], [0, 0, 1, 1], [], []>} : vector<2x128xbf16>, vector<128x128xbf16>, vector<2x128xf32> -> vector<2x128xf32>
    %32 = vector.broadcast %29 : vector<1x128xf32> to vector<2x128xf32>
    %33 = arith.addf %31, %32 : vector<2x128xf32>
    %cst_18 = arith.constant 0.000000e+00 : f32
    %34 = vector.broadcast %cst_18 : f32 to vector<2x128xf32>
    %35 = arith.maximumf %33, %34 : vector<2x128xf32>
    %36 = arith.truncf %35 : vector<2x128xf32> to vector<2x128xbf16>
    %c2 = arith.constant 2 : index
    %c0_19 = arith.constant 0 : index
    %c0_20 = arith.constant 0 : index
    %37 = vector.load %arg6[%c2, %c0_19, %c0_20] : memref<5x128x128xbf16, #tpu.memory_space<vmem>>, vector<1x128x128xbf16>
    %38 = vector.shape_cast %37 : vector<1x128x128xbf16> to vector<128x128xbf16>
    %cst_21 = arith.constant dense<0.000000e+00> : vector<2x128xf32>
    %39 = tpu.matmul %36, %38, %cst_21 {dimension_numbers = #tpu.dot_dimension_numbers<[1], [0], [0], [1], [0, 0, 1, 1], [], []>} : vector<2x128xbf16>, vector<128x128xbf16>, vector<2x128xf32> -> vector<2x128xf32>
    %c0_22 = arith.constant 0 : index
    %c0_23 = arith.constant 0 : index
    %40 = vector.load %arg1[%c0_22, %c0_23] : memref<2x16xf32, #tpu.memory_space<vmem>>, vector<2x16xf32>
    %41 = arith.truncf %40 : vector<2x16xf32> to vector<2x16xbf16>
    %c0_24 = arith.constant 0 : index
    %c0_25 = arith.constant 0 : index
    %42 = vector.load %arg5[%c0_24, %c0_25] : memref<16x128xbf16, #tpu.memory_space<vmem>>, vector<16x128xbf16>
    %cst_26 = arith.constant dense<0.000000e+00> : vector<2x128xf32>
    %43 = tpu.matmul %41, %42, %cst_26 {dimension_numbers = #tpu.dot_dimension_numbers<[1], [0], [0], [1], [0, 0, 1, 1], [], []>} : vector<2x16xbf16>, vector<16x128xbf16>, vector<2x128xf32> -> vector<2x128xf32>
    %44 = arith.addf %39, %43 : vector<2x128xf32>
    %45 = vector.extract_strided_slice %0 {offsets = [4, 0], sizes = [1, 128], strides = [1, 1]} : vector<8x256xf32> to vector<1x128xf32>
    %46 = vector.broadcast %45 : vector<1x128xf32> to vector<2x128xf32>
    %47 = arith.addf %44, %46 : vector<2x128xf32>
    %cst_27 = arith.constant 0.000000e+00 : f32
    %48 = vector.broadcast %cst_27 : f32 to vector<2x128xf32>
    %49 = arith.maximumf %47, %48 : vector<2x128xf32>
    %c3 = arith.constant 3 : index
    %c0_28 = arith.constant 0 : index
    %c0_29 = arith.constant 0 : index
    %50 = vector.load %arg6[%c3, %c0_28, %c0_29] : memref<5x128x128xbf16, #tpu.memory_space<vmem>>, vector<1x128x128xbf16>
    %51 = vector.shape_cast %50 : vector<1x128x128xbf16> to vector<128x128xbf16>
    %52 = vector.extract_strided_slice %0 {offsets = [5, 0], sizes = [1, 128], strides = [1, 1]} : vector<8x256xf32> to vector<1x128xf32>
    %53 = arith.truncf %49 : vector<2x128xf32> to vector<2x128xbf16>
    %cst_30 = arith.constant dense<0.000000e+00> : vector<2x128xf32>
    %54 = tpu.matmul %53, %51, %cst_30 {dimension_numbers = #tpu.dot_dimension_numbers<[1], [0], [0], [1], [0, 0, 1, 1], [], []>} : vector<2x128xbf16>, vector<128x128xbf16>, vector<2x128xf32> -> vector<2x128xf32>
    %55 = vector.broadcast %52 : vector<1x128xf32> to vector<2x128xf32>
    %56 = arith.addf %54, %55 : vector<2x128xf32>
    %cst_31 = arith.constant 0.000000e+00 : f32
    %57 = vector.broadcast %cst_31 : f32 to vector<2x128xf32>
    %58 = arith.maximumf %56, %57 : vector<2x128xf32>
    %59 = arith.truncf %58 : vector<2x128xf32> to vector<2x128xbf16>
    %c4 = arith.constant 4 : index
    %c0_32 = arith.constant 0 : index
    %c0_33 = arith.constant 0 : index
    %60 = vector.load %arg6[%c4, %c0_32, %c0_33] : memref<5x128x128xbf16, #tpu.memory_space<vmem>>, vector<1x128x128xbf16>
    %61 = vector.shape_cast %60 : vector<1x128x128xbf16> to vector<128x128xbf16>
    %cst_34 = arith.constant dense<0.000000e+00> : vector<2x128xf32>
    %62 = tpu.matmul %59, %61, %cst_34 {dimension_numbers = #tpu.dot_dimension_numbers<[1], [0], [0], [1], [0, 0, 1, 1], [], []>} : vector<2x128xbf16>, vector<128x128xbf16>, vector<2x128xf32> -> vector<2x128xf32>
    %63 = vector.extract_strided_slice %0 {offsets = [6, 0], sizes = [1, 128], strides = [1, 1]} : vector<8x256xf32> to vector<1x128xf32>
    %64 = vector.broadcast %63 : vector<1x128xf32> to vector<2x128xf32>
    %65 = arith.addf %62, %64 : vector<2x128xf32>
    %66 = math.tanh %65 : vector<2x128xf32>
    %c0_35 = arith.constant 0 : index
    %c0_36 = arith.constant 0 : index
    %67 = vector.load %arg8[%c0_35, %c0_36] : memref<2x128xf32, #tpu.memory_space<vmem>>, vector<2x128xf32>
    tpu.vector_store %arg8[%c0_35, %c0_36], %66 {strides = array<i32>} : memref<2x128xf32, #tpu.memory_space<vmem>>, vector<2x128xf32>,
    return
  }
  func.func @transform_0(%arg0: i32) -> (i32, i32) {
    %c0_i32 = arith.constant 0 : i32
    %c0_i32_0 = arith.constant 0 : i32
    return %arg0, %c0_i32 : i32, i32
  }
  func.func @transform_1(%arg0: i32) -> (i32, i32) {
    %c0_i32 = arith.constant 0 : i32
    %c0_i32_0 = arith.constant 0 : i32
    return %arg0, %c0_i32 : i32, i32
  }
  func.func @transform_2(%arg0: i32) -> (i32, i32) {
    %c0_i32 = arith.constant 0 : i32
    %c0_i32_0 = arith.constant 0 : i32
    %c0_i32_1 = arith.constant 0 : i32
    return %c0_i32, %c0_i32_0 : i32, i32
  }
  func.func @transform_3(%arg0: i32) -> (i32, i32) {
    %c0_i32 = arith.constant 0 : i32
    %c0_i32_0 = arith.constant 0 : i32
    %c0_i32_1 = arith.constant 0 : i32
    return %c0_i32, %c0_i32_0 : i32, i32
  }
  func.func @transform_4(%arg0: i32) -> (i32, i32) {
    %c0_i32 = arith.constant 0 : i32
    %c0_i32_0 = arith.constant 0 : i32
    %c0_i32_1 = arith.constant 0 : i32
    return %c0_i32, %c0_i32_0 : i32, i32
  }
  func.func @transform_5(%arg0: i32) -> (i32, i32, i32) {
    %c0_i32 = arith.constant 0 : i32
    %c0_i32_0 = arith.constant 0 : i32
    %c0_i32_1 = arith.constant 0 : i32
    %c0_i32_2 = arith.constant 0 : i32
    return %c0_i32, %c0_i32_0, %c0_i32_1 : i32, i32, i32
  }
  func.func @transform_6(%arg0: i32) -> (i32, i32) {
    %c0_i32 = arith.constant 0 : i32
    %c0_i32_0 = arith.constant 0 : i32
    %c0_i32_1 = arith.constant 0 : i32
    return %c0_i32, %c0_i32_0 : i32, i32
  }
  func.func @transform_7(%arg0: i32) -> (i32, i32) {
    %c0_i32 = arith.constant 0 : i32
    %c0_i32_0 = arith.constant 0 : i32
    return %arg0, %c0_i32 : i32, i32
  }
}

</mosaic_0001>

<llo_original>
// kernel: tpu_custom_call.1
$region0: #{tpu_custom_call.1}
  #allocation0 [shape = 'u32[]', space=smem, size = 0x4, offset = 0x4, fixed_abs, tag = 'smem constant byte address 0x4 - core index']
  #allocation1 [shape = 'u32[72,128]{1,0:T(1,128)}', space=vmem, size = 0x9000, scoped, tag = 'internal scratch']
  %s0 = inlined_call_operand.hbm [shape: f32[2,16], index: 0, kind: input, shape index: {}]
  %s1 = inlined_call_operand.hbm [shape: f32[2,16], index: 1, kind: input, shape index: {}]
  %s2 = inlined_call_operand.hbm [shape: bf16[16,256], index: 2, kind: input, shape index: {}]
  %s3 = inlined_call_operand.hbm [shape: bf16[256,128], index: 3, kind: input, shape index: {}]
  %s4 = inlined_call_operand.hbm [shape: bf16[16,128], index: 4, kind: input, shape index: {}]
  %s5 = inlined_call_operand.hbm [shape: bf16[5,128,128], index: 5, kind: input, shape index: {}]
  %s6 = inlined_call_operand.hbm [shape: f32[8,256], index: 6, kind: input, shape index: {}]
  %s7 = inlined_call_operand.hbm [shape: f32[2,128], index: 7, kind: output, shape index: {}]
  %s8 = sld [smem:[#allocation0]]
  $region66: #{tpu_custom_call.1} parent=0
    _
  %s10 = ssub.s32 1, %s8
  %s11 = scalar_select 0, %s10, %s8
  $region1: #{tpu_custom_call.1} parent=0
    #allocation2 [shape = 'u8[1024]{0}', space=vmem, size = 0x400, scoped, tag = 'input window, operand 0, single buffered']
    #allocation3 [shape = 's32[1]{0}', space=sflag, size = 0x4, scoped, tag = 'scoped memory for tpu_custom_call.1']
    #allocation4 [shape = 's32[1]{0}', space=sflag, size = 0x4, scoped, tag = 'scoped memory for tpu_custom_call.1']
    #allocation5 [shape = 'u8[1024]{0}', space=vmem, size = 0x400, scoped, tag = 'input window, operand 1, single buffered']
    #allocation6 [shape = 's32[1]{0}', space=sflag, size = 0x4, scoped, tag = 'scoped memory for tpu_custom_call.1']
    #allocation7 [shape = 'u8[8192]{0}', space=vmem, size = 0x2000, scoped, tag = 'input window, operand 2, single buffered']
    #allocation8 [shape = 'u8[65536]{0}', space=vmem, size = 0x10000, scoped, tag = 'input window, operand 3, single buffered']
    #allocation9 [shape = 's32[1]{0}', space=sflag, size = 0x4, scoped, tag = 'scoped memory for tpu_custom_call.1']
    #allocation10 [shape = 'u8[4096]{0}', space=vmem, size = 0x1000, scoped, tag = 'input window, operand 4, single buffered']
    #allocation11 [shape = 'u8[163840]{0}', space=vmem, size = 0x28000, scoped, tag = 'input window, operand 5, single buffered']
    #allocation12 [shape = 's32[1]{0}', space=sflag, size = 0x4, scoped, tag = 'scoped memory for tpu_custom_call.1']
    #allocation13 [shape = 'u8[8192]{0}', space=vmem, size = 0x2000, scoped, tag = 'input window, operand 6, single buffered']
    #allocation14 [shape = 'u8[1024]{0}', space=vmem, size = 0x400, scoped, tag = 'output window, operand 0, single buffered']
    %12 = vsyncpa [#allocation3], 0
    %13 = vsyncpa [#allocation6], 0
    %14 = vsyncpa [#allocation9], 0
    %15 = vsyncpa [#allocation12], 0
    %16 = vsyncpa [#allocation4], 0
    // Predicated region
    $region2: #{tpu_custom_call.1} parent=1 // pred_check
      _
    $region3: #{tpu_custom_call.1} parent=1 // pred_check_branch
      %18 = sbr.rel (0) target = $region5
    $region4: #{tpu_custom_call.1} parent=1 // pred_region
      %20 = vsyncadd [#allocation3], 0
      %s22 = sshll.u32 %s0, 4
      %s23 = int_to_ptr.hbm [resolvable:$true] %s22
      %s24 = sshll.u32 [#allocation2], 4
      %s25 = int_to_ptr.vmem [resolvable:$true] %s24
      %27 = dma.hbm_to_vmem [thread:$0]  %s23, 32, %s25, [#allocation3]
    $region5: #{tpu_custom_call.1} parent=1 // pred_fallthru
      _
    // Predicated region
    $region6: #{tpu_custom_call.1} parent=1 // pred_check
      _
    $region7: #{tpu_custom_call.1} parent=1 // pred_check_branch
      %29 = sbr.rel (0) target = $region9
    $region8: #{tpu_custom_call.1} parent=1 // pred_region
      %31 = vsyncadd [#allocation6], 0
      %s33 = sshll.u32 %s1, 4
      %s34 = int_to_ptr.hbm [resolvable:$true] %s33
      %s35 = sshll.u32 [#allocation5], 4
      %s36 = int_to_ptr.vmem [resolvable:$true] %s35
      %38 = dma.hbm_to_vmem [thread:$0]  %s34, 32, %s36, [#allocation6]
    $region9: #{tpu_custom_call.1} parent=1 // pred_fallthru
      _
    // Predicated region
    $region10: #{tpu_custom_call.1} parent=1 // pred_check
      _
    $region11: #{tpu_custom_call.1} parent=1 // pred_check_branch
      %40 = sbr.rel (0) target = $region13
    $region12: #{tpu_custom_call.1} parent=1 // pred_region
      %42 = vsyncadd [#allocation6], 0
      %s43 = sshll.u32 %s2, 4
      %s44 = int_to_ptr.hbm [resolvable:$true] %s43
      %s45 = sshll.u32 [#allocation7], 4
      %s46 = int_to_ptr.vmem [resolvable:$true] %s45
      %51 = dma.hbm_to_vmem [thread:$0]  %s44, 256, %s46, [#allocation6], 128, 128, 8
    $region13: #{tpu_custom_call.1} parent=1 // pred_fallthru
      _
    // Predicated region
    $region14: #{tpu_custom_call.1} parent=1 // pred_check
      _
    $region15: #{tpu_custom_call.1} parent=1 // pred_check_branch
      %53 = sbr.rel (0) target = $region17
    $region16: #{tpu_custom_call.1} parent=1 // pred_region
      %55 = vsyncadd [#allocation9], 0
      %s56 = sshll.u32 %s3, 4
      %s57 = int_to_ptr.hbm [resolvable:$true] %s56
      %s58 = sshll.u32 [#allocation8], 4
      %s59 = int_to_ptr.vmem [resolvable:$true] %s58
      %64 = dma.hbm_to_vmem [thread:$0]  %s57, 2048, %s59, [#allocation9], 64, 64, 4
    $region17: #{tpu_custom_call.1} parent=1 // pred_fallthru
      _
    // Predicated region
    $region18: #{tpu_custom_call.1} parent=1 // pred_check
      _
    $region19: #{tpu_custom_call.1} parent=1 // pred_check_branch
      %66 = sbr.rel (0) target = $region21
    $region20: #{tpu_custom_call.1} parent=1 // pred_region
      %68 = vsyncadd [#allocation9], 0
      %s69 = sshll.u32 %s4, 4
      %s70 = int_to_ptr.hbm [resolvable:$true] %s69
      %s71 = sshll.u32 [#allocation10], 4
      %s72 = int_to_ptr.vmem [resolvable:$true] %s71
      %77 = dma.hbm_to_vmem [thread:$0]  %s70, 128, %s72, [#allocation9], 64, 64, 4
    $region21: #{tpu_custom_call.1} parent=1 // pred_fallthru
      _
    // Predicated region
    $region22: #{tpu_custom_call.1} parent=1 // pred_check
      _
    $region23: #{tpu_custom_call.1} parent=1 // pred_check_branch
      %79 = sbr.rel (0) target = $region25
    $region24: #{tpu_custom_call.1} parent=1 // pred_region
      %81 = vsyncadd [#allocation12], 0
      %s82 = sshll.u32 %s5, 4
      %s83 = int_to_ptr.hbm [resolvable:$true] %s82
      %s84 = sshll.u32 [#allocation11], 4
      %s85 = int_to_ptr.vmem [resolvable:$true] %s84
      %90 = dma.hbm_to_vmem [thread:$0]  %s83, 5120, %s85, [#allocation12], 64, 64, 4
    $region25: #{tpu_custom_call.1} parent=1 // pred_fallthru
      _
    // Predicated region
    $region26: #{tpu_custom_call.1} parent=1 // pred_check
      _
    $region27: #{tpu_custom_call.1} parent=1 // pred_check_branch
      %92 = sbr.rel (0) target = $region29
    $region28: #{tpu_custom_call.1} parent=1 // pred_region
      %94 = vsyncadd [#allocation12], 0
      %s96 = sshll.u32 %s6, 4
      %s97 = int_to_ptr.hbm [resolvable:$true] %s96
      %s98 = sshll.u32 [#allocation13], 4
      %s99 = int_to_ptr.vmem [resolvable:$true] %s98
      %101 = dma.hbm_to_vmem [thread:$0]  %s97, 256, %s99, [#allocation12]
    $region29: #{tpu_custom_call.1} parent=1 // pred_fallthru
      _
    // Predicated region
    $region30: #{tpu_custom_call.1} parent=1 // pred_check
      _
    $region31: #{tpu_custom_call.1} parent=1 // pred_check_branch
      %103 = sbr.rel (0) target = $region33
    $region32: #{tpu_custom_call.1} parent=1 // pred_region
      %105 = dma.done [#allocation3], 32
    $region33: #{tpu_custom_call.1} parent=1 // pred_fallthru
      _
    // Predicated region
    $region34: #{tpu_custom_call.1} parent=1 // pred_check
      _
    $region35: #{tpu_custom_call.1} parent=1 // pred_check_branch
      %107 = sbr.rel (0) target = $region37
    $region36: #{tpu_custom_call.1} parent=1 // pred_region
      %109 = dma.done [#allocation6], 32
    $region37: #{tpu_custom_call.1} parent=1 // pred_fallthru
      _
    // Predicated region
    $region38: #{tpu_custom_call.1} parent=1 // pred_check
      _
    $region39: #{tpu_custom_call.1} parent=1 // pred_check_branch
      %111 = sbr.rel (0) target = $region41
    $region40: #{tpu_custom_call.1} parent=1 // pred_region
      %113 = dma.done [#allocation6], 256
    $region41: #{tpu_custom_call.1} parent=1 // pred_fallthru
      _
    // Predicated region
    $region42: #{tpu_custom_call.1} parent=1 // pred_check
      _
    $region43: #{tpu_custom_call.1} parent=1 // pred_check_branch
      %115 = sbr.rel (0) target = $region45
    $region44: #{tpu_custom_call.1} parent=1 // pred_region
      %117 = dma.done [#allocation9], 2048
    $region45: #{tpu_custom_call.1} parent=1 // pred_fallthru
      _
    // Predicated region
    $region46: #{tpu_custom_call.1} parent=1 // pred_check
      _
    $region47: #{tpu_custom_call.1} parent=1 // pred_check_branch
      %119 = sbr.rel (0) target = $region49
    $region48: #{tpu_custom_call.1} parent=1 // pred_region
      %121 = dma.done [#allocation9], 128
    $region49: #{tpu_custom_call.1} parent=1 // pred_fallthru
      _
    // Predicated region
    $region50: #{tpu_custom_call.1} parent=1 // pred_check
      _
    $region51: #{tpu_custom_call.1} parent=1 // pred_check_branch
      %123 = sbr.rel (0) target = $region53
    $region52: #{tpu_custom_call.1} parent=1 // pred_region
      %125 = dma.done [#allocation12], 5120
    $region53: #{tpu_custom_call.1} parent=1 // pred_fallthru
      _
    // Predicated region
    $region54: #{tpu_custom_call.1} parent=1 // pred_check
      _
    $region55: #{tpu_custom_call.1} parent=1 // pred_check_branch
      %127 = sbr.rel (0) target = $region57
    $region56: #{tpu_custom_call.1} parent=1 // pred_region
      %129 = dma.done [#allocation12], 256
    $region57: #{tpu_custom_call.1} parent=1 // pred_fallthru
      _
    %v131 = vld [vmem:[#allocation13] sm:$0xff]
    %v132 = vld [vmem:[#allocation13 + $0x8] sm:$0xff]
    %v133 = vld [vmem:[#allocation5] sm:$0x3]
    %v134 = vld [vmem:[#allocation7] sm:$0xff]
    %v135 = vld [vmem:[#allocation7 + $0x8] sm:$0xff]
    %v136 = vpack.c.bf16 %v133, %v133
    %v137 = vperm.slane %v131, 0
    %v138 = vperm.slane %v132, 0
    %v141 = vunpack.c.l.b16 %v134
    %v142 = vunpack.c.h.b16 %v134
    %v143 = vunpack.c.l.b16 %v135
    %v144 = vunpack.c.h.b16 %v135
    %v145 = vpack.c.b16 %v143, %v141
    %v146 = vpack.c.b16 %v144, %v142
    %vm149 = vcmask 130048
    %v151 = vsel %vm149, %v136, 0
    %153 = vmatpush.bf16.msra.mxu0 0
    %154 = vmatpush.bf16.msra.mxu0 0
    %155 = vmatpush.bf16.msra.mxu0 0
    %156 = vmatpush.bf16.msra.mxu0 0
    %157 = vmatpush.bf16.msra.mxu0 0
    %158 = vmatpush.bf16.msra.mxu0 0
    %159 = vmatpush.bf16.msra.mxu0 0
    %160 = vmatpush.bf16.msra.mxu0 %v145
    %161 = vmatmul.bf16.gmra.mxu0 %v151
    %v162 = vpop.f32.mrf.mxu0
    %v163 = vadd.f32 %v137, %v162
    %v164 = vpop.f32.mrf.mxu0
    %165 = vdwg.mxu0
    %166 = vmatpush.bf16.msra.mxu0 0
    %167 = vmatpush.bf16.msra.mxu0 0
    %168 = vmatpush.bf16.msra.mxu0 0
    %169 = vmatpush.bf16.msra.mxu0 0
    %170 = vmatpush.bf16.msra.mxu0 0
    %171 = vmatpush.bf16.msra.mxu0 0
    %172 = vmatpush.bf16.msra.mxu0 0
    %173 = vmatpush.bf16.msra.mxu0 %v146
    %174 = vmatmul.bf16.gmra.mxu0 %v151
    %v175 = vpop.f32.mrf.mxu0
    %v176 = vadd.f32 %v138, %v175
    %v177 = vpop.f32.mrf.mxu0
    %178 = vdwg.mxu0
    %v179 = vmax.f32 %v163, 0.0
    %v180 = vmax.f32 %v176, 0.0
    %v181 = vld [vmem:[#allocation8] sm:$0xf]
    %v182 = vld [vmem:[#allocation8 + $0x4] sm:$0xf]
    %v183 = vld [vmem:[#allocation8 + $0x8] sm:$0xf]
    %v184 = vld [vmem:[#allocation8 + $0xc] sm:$0xf]
    %v185 = vld [vmem:[#allocation8 + $0x10] sm:$0xf]
    %v186 = vld [vmem:[#allocation8 + $0x14] sm:$0xf]
    %v187 = vld [vmem:[#allocation8 + $0x18] sm:$0xf]
    %v188 = vld [vmem:[#allocation8 + $0x1c] sm:$0xf]
    %v189 = vld [vmem:[#allocation8 + $0x20] sm:$0xf]
    %v190 = vld [vmem:[#allocation8 + $0x24] sm:$0xf]
    %v191 = vld [vmem:[#allocation8 + $0x28] sm:$0xf]
    %v192 = vld [vmem:[#allocation8 + $0x2c] sm:$0xf]
    %v193 = vld [vmem:[#allocation8 + $0x30] sm:$0xf]
    %v194 = vld [vmem:[#allocation8 + $0x34] sm:$0xf]
    %v195 = vld [vmem:[#allocation8 + $0x38] sm:$0xf]
    %v196 = vld [vmem:[#allocation8 + $0x3c] sm:$0xf]
    %v197 = vld [vmem:[#allocation8 + $0x40] sm:$0xf]
    %v198 = vld [vmem:[#allocation8 + $0x44] sm:$0xf]
    %v199 = vld [vmem:[#allocation8 + $0x48] sm:$0xf]
    %v200 = vld [vmem:[#allocation8 + $0x4c] sm:$0xf]
    %v201 = vld [vmem:[#allocation8 + $0x50] sm:$0xf]
    %v202 = vld [vmem:[#allocation8 + $0x54] sm:$0xf]
    %v203 = vld [vmem:[#allocation8 + $0x58] sm:$0xf]
    %v204 = vld [vmem:[#allocation8 + $0x5c] sm:$0xf]
    %v205 = vld [vmem:[#allocation8 + $0x60] sm:$0xf]
    %v206 = vld [vmem:[#allocation8 + $0x64] sm:$0xf]
    %v207 = vld [vmem:[#allocation8 + $0x68] sm:$0xf]
    %v208 = vld [vmem:[#allocation8 + $0x6c] sm:$0xf]
    %v209 = vld [vmem:[#allocation8 + $0x70] sm:$0xf]
    %v210 = vld [vmem:[#allocation8 + $0x74] sm:$0xf]
    %v211 = vld [vmem:[#allocation8 + $0x78] sm:$0xf]
    %v212 = vld [vmem:[#allocation8 + $0x7c] sm:$0xf]
    %v213 = vpack.c.bf16 %v179, %v179
    %v214 = vpack.c.bf16 %v180, %v180
    %v215 = vperm.slane %v131, 1
    %v248 = vunpack.c.l.b16 %v181
    %v249 = vunpack.c.l.b16 %v182
    %v250 = vunpack.c.l.b16 %v183
    %v251 = vunpack.c.l.b16 %v184
    %v252 = vunpack.c.l.b16 %v185
    %v253 = vunpack.c.l.b16 %v186
    %v254 = vunpack.c.l.b16 %v187
    %v255 = vunpack.c.l.b16 %v188
    %v256 = vunpack.c.l.b16 %v189
    %v257 = vunpack.c.l.b16 %v190
    %v258 = vunpack.c.l.b16 %v191
    %v259 = vunpack.c.l.b16 %v192
    %v260 = vunpack.c.l.b16 %v193
    %v261 = vunpack.c.l.b16 %v194
    %v262 = vunpack.c.l.b16 %v195
    %v263 = vunpack.c.l.b16 %v196
    %v264 = vunpack.c.l.b16 %v197
    %v265 = vunpack.c.l.b16 %v198
    %v266 = vunpack.c.l.b16 %v199
    %v267 = vunpack.c.l.b16 %v200
    %v268 = vunpack.c.l.b16 %v201
    %v269 = vunpack.c.l.b16 %v202
    %v270 = vunpack.c.l.b16 %v203
    %v271 = vunpack.c.l.b16 %v204
    %v272 = vunpack.c.l.b16 %v205
    %v273 = vunpack.c.l.b16 %v206
    %v274 = vunpack.c.l.b16 %v207
    %v275 = vunpack.c.l.b16 %v208
    %v276 = vunpack.c.l.b16 %v209
    %v277 = vunpack.c.l.b16 %v210
    %v278 = vunpack.c.l.b16 %v211
    %v279 = vunpack.c.l.b16 %v212
    %v280 = vpack.c.b16 %v249, %v248
    %v281 = vpack.c.b16 %v251, %v250
    %v282 = vpack.c.b16 %v253, %v252
    %v283 = vpack.c.b16 %v255, %v254
    %v284 = vpack.c.b16 %v257, %v256
    %v285 = vpack.c.b16 %v259, %v258
    %v286 = vpack.c.b16 %v261, %v260
    %v287 = vpack.c.b16 %v263, %v262
    %v288 = vpack.c.b16 %v265, %v264
    %v289 = vpack.c.b16 %v267, %v266
    %v290 = vpack.c.b16 %v269, %v268
    %v291 = vpack.c.b16 %v271, %v270
    %v292 = vpack.c.b16 %v273, %v272
    %v293 = vpack.c.b16 %v275, %v274
    %v294 = vpack.c.b16 %v277, %v276
    %v295 = vpack.c.b16 %v279, %v278
    %312 = vmatpush.bf16.msra.mxu0 %v287
    %313 = vmatpush.bf16.msra.mxu0 %v286
    %314 = vmatpush.bf16.msra.mxu0 %v285
    %315 = vmatpush.bf16.msra.mxu0 %v284
    %316 = vmatpush.bf16.msra.mxu0 %v283
    %317 = vmatpush.bf16.msra.mxu0 %v282
    %318 = vmatpush.bf16.msra.mxu0 %v281
    %319 = vmatpush.bf16.msra.mxu0 %v280
    %320 = vmatmul.bf16.gmra.mxu0 %v213
    %v321 = vpop.f32.mrf.mxu0
    %v322 = vadd.f32 %v215, %v321
    %v323 = vpop.f32.mrf.mxu0
    %324 = vdwg.mxu0
    %325 = vmatpush.bf16.msra.mxu0 %v295
    %326 = vmatpush.bf16.msra.mxu0 %v294
    %327 = vmatpush.bf16.msra.mxu0 %v293
    %328 = vmatpush.bf16.msra.mxu0 %v292
    %329 = vmatpush.bf16.msra.mxu0 %v291
    %330 = vmatpush.bf16.msra.mxu0 %v290
    %331 = vmatpush.bf16.msra.mxu0 %v289
    %332 = vmatpush.bf16.msra.mxu0 %v288
    %333 = vmatmul.bf16.gmra.mxu0 %v214
    %v334 = vpop.f32.mrf.mxu0
    %v335 = vadd.f32 %v322, %v334
    %v336 = vpop.f32.mrf.mxu0
    %337 = vdwg.mxu0
    %v338 = vmax.f32 %v335, 0.0
    %v339 = vld [vmem:[#allocation11] sm:$0xf]
    %v340 = vld [vmem:[#allocation11 + $0x4] sm:$0xf]
    %v341 = vld [vmem:[#allocation11 + $0x8] sm:$0xf]
    %v342 = vld [vmem:[#allocation11 + $0xc] sm:$0xf]
    %v343 = vld [vmem:[#allocation11 + $0x10] sm:$0xf]
    %v344 = vld [vmem:[#allocation11 + $0x14] sm:$0xf]
    %v345 = vld [vmem:[#allocation11 + $0x18] sm:$0xf]
    %v346 = vld [vmem:[#allocation11 + $0x1c] sm:$0xf]
    %v347 = vld [vmem:[#allocation11 + $0x20] sm:$0xf]
    %v348 = vld [vmem:[#allocation11 + $0x24] sm:$0xf]
    %v349 = vld [vmem:[#allocation11 + $0x28] sm:$0xf]
    %v350 = vld [vmem:[#allocation11 + $0x2c] sm:$0xf]
    %v351 = vld [vmem:[#allocation11 + $0x30] sm:$0xf]
    %v352 = vld [vmem:[#allocation11 + $0x34] sm:$0xf]
    %v353 = vld [vmem:[#allocation11 + $0x38] sm:$0xf]
    %v354 = vld [vmem:[#allocation11 + $0x3c] sm:$0xf]
    %v355 = vpack.c.bf16 %v338, %v338
    %v356 = vperm.slane %v131, 2
    %v373 = vunpack.c.l.b16 %v339
    %v374 = vunpack.c.l.b16 %v340
    %v375 = vunpack.c.l.b16 %v341
    %v376 = vunpack.c.l.b16 %v342
    %v377 = vunpack.c.l.b16 %v343
    %v378 = vunpack.c.l.b16 %v344
    %v379 = vunpack.c.l.b16 %v345
    %v380 = vunpack.c.l.b16 %v346
    %v381 = vunpack.c.l.b16 %v347
    %v382 = vunpack.c.l.b16 %v348
    %v383 = vunpack.c.l.b16 %v349
    %v384 = vunpack.c.l.b16 %v350
    %v385 = vunpack.c.l.b16 %v351
    %v386 = vunpack.c.l.b16 %v352
    %v387 = vunpack.c.l.b16 %v353
    %v388 = vunpack.c.l.b16 %v354
    %v389 = vpack.c.b16 %v374, %v373
    %v390 = vpack.c.b16 %v376, %v375
    %v391 = vpack.c.b16 %v378, %v377
    %v392 = vpack.c.b16 %v380, %v379
    %v393 = vpack.c.b16 %v382, %v381
    %v394 = vpack.c.b16 %v384, %v383
    %v395 = vpack.c.b16 %v386, %v385
    %v396 = vpack.c.b16 %v388, %v387
    %405 = vmatpush.bf16.msra.mxu0 %v396
    %406 = vmatpush.bf16.msra.mxu0 %v395
    %407 = vmatpush.bf16.msra.mxu0 %v394
    %408 = vmatpush.bf16.msra.mxu0 %v393
    %409 = vmatpush.bf16.msra.mxu0 %v392
    %410 = vmatpush.bf16.msra.mxu0 %v391
    %411 = vmatpush.bf16.msra.mxu0 %v390
    %412 = vmatpush.bf16.msra.mxu0 %v389
    %413 = vmatmul.bf16.gmra.mxu0 %v355
    %v414 = vpop.f32.mrf.mxu0
    %v415 = vadd.f32 %v356, %v414
    %v416 = vpop.f32.mrf.mxu0
    %417 = vdwg.mxu0
    %v418 = vmax.f32 %v415, 0.0
    %s419 = scalar_lea.vmem [#allocation11], 64
    %v420 = vld [vmem:[%s419] sm:$0xf]
    %v421 = vld [vmem:[%s419 + $0x4] sm:$0xf]
    %v422 = vld [vmem:[%s419 + $0x8] sm:$0xf]
    %v423 = vld [vmem:[%s419 + $0xc] sm:$0xf]
    %v424 = vld [vmem:[%s419 + $0x10] sm:$0xf]
    %v425 = vld [vmem:[%s419 + $0x14] sm:$0xf]
    %v426 = vld [vmem:[%s419 + $0x18] sm:$0xf]
    %v427 = vld [vmem:[%s419 + $0x1c] sm:$0xf]
    %v428 = vld [vmem:[%s419 + $0x20] sm:$0xf]
    %v429 = vld [vmem:[%s419 + $0x24] sm:$0xf]
    %v430 = vld [vmem:[%s419 + $0x28] sm:$0xf]
    %v431 = vld [vmem:[%s419 + $0x2c] sm:$0xf]
    %v432 = vld [vmem:[%s419 + $0x30] sm:$0xf]
    %v433 = vld [vmem:[%s419 + $0x34] sm:$0xf]
    %v434 = vld [vmem:[%s419 + $0x38] sm:$0xf]
    %v435 = vld [vmem:[%s419 + $0x3c] sm:$0xf]
    %v436 = vpack.c.bf16 %v418, %v418
    %v437 = vperm.slane %v131, 3
    %v454 = vunpack.c.l.b16 %v420
    %v455 = vunpack.c.l.b16 %v421
    %v456 = vunpack.c.l.b16 %v422
    %v457 = vunpack.c.l.b16 %v423
    %v458 = vunpack.c.l.b16 %v424
    %v459 = vunpack.c.l.b16 %v425
    %v460 = vunpack.c.l.b16 %v426
    %v461 = vunpack.c.l.b16 %v427
    %v462 = vunpack.c.l.b16 %v428
    %v463 = vunpack.c.l.b16 %v429
    %v464 = vunpack.c.l.b16 %v430
    %v465 = vunpack.c.l.b16 %v431
    %v466 = vunpack.c.l.b16 %v432
    %v467 = vunpack.c.l.b16 %v433
    %v468 = vunpack.c.l.b16 %v434
    %v469 = vunpack.c.l.b16 %v435
    %v470 = vpack.c.b16 %v455, %v454
    %v471 = vpack.c.b16 %v457, %v456
    %v472 = vpack.c.b16 %v459, %v458
    %v473 = vpack.c.b16 %v461, %v460
    %v474 = vpack.c.b16 %v463, %v462
    %v475 = vpack.c.b16 %v465, %v464
    %v476 = vpack.c.b16 %v467, %v466
    %v477 = vpack.c.b16 %v469, %v468
    %486 = vmatpush.bf16.msra.mxu0 %v477
    %487 = vmatpush.bf16.msra.mxu0 %v476
    %488 = vmatpush.bf16.msra.mxu0 %v475
    %489 = vmatpush.bf16.msra.mxu0 %v474
    %490 = vmatpush.bf16.msra.mxu0 %v473
    %491 = vmatpush.bf16.msra.mxu0 %v472
    %492 = vmatpush.bf16.msra.mxu0 %v471
    %493 = vmatpush.bf16.msra.mxu0 %v470
    %494 = vmatmul.bf16.gmra.mxu0 %v436
    %v495 = vpop.f32.mrf.mxu0
    %v496 = vadd.f32 %v437, %v495
    %v497 = vpop.f32.mrf.mxu0
    %498 = vdwg.mxu0
    %v499 = vmax.f32 %v496, 0.0
    %v500 = vpack.c.bf16 %v499, %v499
    %s501 = scalar_lea.vmem [#allocation11], 128
    %v502 = vld [vmem:[%s501] sm:$0xf]
    %v503 = vld [vmem:[%s501 + $0x4] sm:$0xf]
    %v504 = vld [vmem:[%s501 + $0x8] sm:$0xf]
    %v505 = vld [vmem:[%s501 + $0xc] sm:$0xf]
    %v506 = vld [vmem:[%s501 + $0x10] sm:$0xf]
    %v507 = vld [vmem:[%s501 + $0x14] sm:$0xf]
    %v508 = vld [vmem:[%s501 + $0x18] sm:$0xf]
    %v509 = vld [vmem:[%s501 + $0x1c] sm:$0xf]
    %v510 = vld [vmem:[%s501 + $0x20] sm:$0xf]
    %v511 = vld [vmem:[%s501 + $0x24] sm:$0xf]
    %v512 = vld [vmem:[%s501 + $0x28] sm:$0xf]
    %v513 = vld [vmem:[%s501 + $0x2c] sm:$0xf]
    %v514 = vld [vmem:[%s501 + $0x30] sm:$0xf]
    %v515 = vld [vmem:[%s501 + $0x34] sm:$0xf]
    %v516 = vld [vmem:[%s501 + $0x38] sm:$0xf]
    %v517 = vld [vmem:[%s501 + $0x3c] sm:$0xf]
    %v518 = vld [vmem:[#allocation2] sm:$0x3]
    %v519 = vpack.c.bf16 %v518, %v518
    %v520 = vld [vmem:[#allocation10] sm:$0xf]
    %v521 = vld [vmem:[#allocation10 + $0x4] sm:$0xf]
    %v524 = vunpack.c.l.b16 %v520
    %v525 = vunpack.c.l.b16 %v521
    %v526 = vpack.c.b16 %v525, %v524
    %v529 = vsel %vm149, %v519, 0
    %531 = vmatpush.bf16.msra.mxu0 0
    %532 = vmatpush.bf16.msra.mxu0 0
    %533 = vmatpush.bf16.msra.mxu0 0
    %534 = vmatpush.bf16.msra.mxu0 0
    %535 = vmatpush.bf16.msra.mxu0 0
    %536 = vmatpush.bf16.msra.mxu0 0
    %537 = vmatpush.bf16.msra.mxu0 0
    %538 = vmatpush.bf16.msra.mxu0 %v526
    %539 = vmatmul.bf16.gmra.mxu0 %v529
    %v540 = vpop.f32.mrf.mxu0
    %v541 = vadd.f32 0.0, %v540
    %v542 = vpop.f32.mrf.mxu0
    %543 = vdwg.mxu0
    %v560 = vunpack.c.l.b16 %v502
    %v561 = vunpack.c.l.b16 %v503
    %v562 = vunpack.c.l.b16 %v504
    %v563 = vunpack.c.l.b16 %v505
    %v564 = vunpack.c.l.b16 %v506
    %v565 = vunpack.c.l.b16 %v507
    %v566 = vunpack.c.l.b16 %v508
    %v567 = vunpack.c.l.b16 %v509
    %v568 = vunpack.c.l.b16 %v510
    %v569 = vunpack.c.l.b16 %v511
    %v570 = vunpack.c.l.b16 %v512
    %v571 = vunpack.c.l.b16 %v513
    %v572 = vunpack.c.l.b16 %v514
    %v573 = vunpack.c.l.b16 %v515
    %v574 = vunpack.c.l.b16 %v516
    %v575 = vunpack.c.l.b16 %v517
    %v576 = vpack.c.b16 %v561, %v560
    %v577 = vpack.c.b16 %v563, %v562
    %v578 = vpack.c.b16 %v565, %v564
    %v579 = vpack.c.b16 %v567, %v566
    %v580 = vpack.c.b16 %v569, %v568
    %v581 = vpack.c.b16 %v571, %v570
    %v582 = vpack.c.b16 %v573, %v572
    %v583 = vpack.c.b16 %v575, %v574
    %592 = vmatpush.bf16.msra.mxu0 %v583
    %593 = vmatpush.bf16.msra.mxu0 %v582
    %594 = vmatpush.bf16.msra.mxu0 %v581
    %595 = vmatpush.bf16.msra.mxu0 %v580
    %596 = vmatpush.bf16.msra.mxu0 %v579
    %597 = vmatpush.bf16.msra.mxu0 %v578
    %598 = vmatpush.bf16.msra.mxu0 %v577
    %599 = vmatpush.bf16.msra.mxu0 %v576
    %600 = vmatmul.bf16.gmra.mxu0 %v500
    %v601 = vpop.f32.mrf.mxu0
    %v602 = vadd.f32 %v541, %v601
    %v603 = vpop.f32.mrf.mxu0
    %604 = vdwg.mxu0
    %v605 = vperm.slane %v131, 4
    %v606 = vadd.f32 %v602, %v605
    %v607 = vmax.f32 %v606, 0.0
    %s608 = scalar_lea.vmem [#allocation11], 192
    %v609 = vld [vmem:[%s608] sm:$0xf]
    %v610 = vld [vmem:[%s608 + $0x4] sm:$0xf]
    %v611 = vld [vmem:[%s608 + $0x8] sm:$0xf]
    %v612 = vld [vmem:[%s608 + $0xc] sm:$0xf]
    %v613 = vld [vmem:[%s608 + $0x10] sm:$0xf]
    %v614 = vld [vmem:[%s608 + $0x14] sm:$0xf]
    %v615 = vld [vmem:[%s608 + $0x18] sm:$0xf]
    %v616 = vld [vmem:[%s608 + $0x1c] sm:$0xf]
    %v617 = vld [vmem:[%s608 + $0x20] sm:$0xf]
    %v618 = vld [vmem:[%s608 + $0x24] sm:$0xf]
    %v619 = vld [vmem:[%s608 + $0x28] sm:$0xf]
    %v620 = vld [vmem:[%s608 + $0x2c] sm:$0xf]
    %v621 = vld [vmem:[%s608 + $0x30] sm:$0xf]
    %v622 = vld [vmem:[%s608 + $0x34] sm:$0xf]
    %v623 = vld [vmem:[%s608 + $0x38] sm:$0xf]
    %v624 = vld [vmem:[%s608 + $0x3c] sm:$0xf]
    %v625 = vpack.c.bf16 %v607, %v607
    %v626 = vperm.slane %v131, 5
    %v643 = vunpack.c.l.b16 %v609
    %v644 = vunpack.c.l.b16 %v610
    %v645 = vunpack.c.l.b16 %v611
    %v646 = vunpack.c.l.b16 %v612
    %v647 = vunpack.c.l.b16 %v613
    %v648 = vunpack.c.l.b16 %v614
    %v649 = vunpack.c.l.b16 %v615
    %v650 = vunpack.c.l.b16 %v616
    %v651 = vunpack.c.l.b16 %v617
    %v652 = vunpack.c.l.b16 %v618
    %v653 = vunpack.c.l.b16 %v619
    %v654 = vunpack.c.l.b16 %v620
    %v655 = vunpack.c.l.b16 %v621
    %v656 = vunpack.c.l.b16 %v622
    %v657 = vunpack.c.l.b16 %v623
    %v658 = vunpack.c.l.b16 %v624
    %v659 = vpack.c.b16 %v644, %v643
    %v660 = vpack.c.b16 %v646, %v645
    %v661 = vpack.c.b16 %v648, %v647
    %v662 = vpack.c.b16 %v650, %v649
    %v663 = vpack.c.b16 %v652, %v651
    %v664 = vpack.c.b16 %v654, %v653
    %v665 = vpack.c.b16 %v656, %v655
    %v666 = vpack.c.b16 %v658, %v657
    %675 = vmatpush.bf16.msra.mxu0 %v666
    %676 = vmatpush.bf16.msra.mxu0 %v665
    %677 = vmatpush.bf16.msra.mxu0 %v664
    %678 = vmatpush.bf16.msra.mxu0 %v663
    %679 = vmatpush.bf16.msra.mxu0 %v662
    %680 = vmatpush.bf16.msra.mxu0 %v661
    %681 = vmatpush.bf16.msra.mxu0 %v660
    %682 = vmatpush.bf16.msra.mxu0 %v659
    %683 = vmatmul.bf16.gmra.mxu0 %v625
    %v684 = vpop.f32.mrf.mxu0
    %v685 = vadd.f32 %v626, %v684
    %v686 = vpop.f32.mrf.mxu0
    %687 = vdwg.mxu0
    %v688 = vmax.f32 %v685, 0.0
    %v689 = vpack.c.bf16 %v688, %v688
    %s690 = scalar_lea.vmem [#allocation11], 256
    %v691 = vld [vmem:[%s690] sm:$0xf]
    %v692 = vld [vmem:[%s690 + $0x4] sm:$0xf]
    %v693 = vld [vmem:[%s690 + $0x8] sm:$0xf]
    %v694 = vld [vmem:[%s690 + $0xc] sm:$0xf]
    %v695 = vld [vmem:[%s690 + $0x10] sm:$0xf]
    %v696 = vld [vmem:[%s690 + $0x14] sm:$0xf]
    %v697 = vld [vmem:[%s690 + $0x18] sm:$0xf]
    %v698 = vld [vmem:[%s690 + $0x1c] sm:$0xf]
    %v699 = vld [vmem:[%s690 + $0x20] sm:$0xf]
    %v700 = vld [vmem:[%s690 + $0x24] sm:$0xf]
    %v701 = vld [vmem:[%s690 + $0x28] sm:$0xf]
    %v702 = vld [vmem:[%s690 + $0x2c] sm:$0xf]
    %v703 = vld [vmem:[%s690 + $0x30] sm:$0xf]
    %v704 = vld [vmem:[%s690 + $0x34] sm:$0xf]
    %v705 = vld [vmem:[%s690 + $0x38] sm:$0xf]
    %v706 = vld [vmem:[%s690 + $0x3c] sm:$0xf]
    %v707 = vperm.slane %v131, 6
    %v724 = vunpack.c.l.b16 %v691
    %v725 = vunpack.c.l.b16 %v692
    %v726 = vunpack.c.l.b16 %v693
    %v727 = vunpack.c.l.b16 %v694
    %v728 = vunpack.c.l.b16 %v695
    %v729 = vunpack.c.l.b16 %v696
    %v730 = vunpack.c.l.b16 %v697
    %v731 = vunpack.c.l.b16 %v698
    %v732 = vunpack.c.l.b16 %v699
    %v733 = vunpack.c.l.b16 %v700
    %v734 = vunpack.c.l.b16 %v701
    %v735 = vunpack.c.l.b16 %v702
    %v736 = vunpack.c.l.b16 %v703
    %v737 = vunpack.c.l.b16 %v704
    %v738 = vunpack.c.l.b16 %v705
    %v739 = vunpack.c.l.b16 %v706
    %v740 = vpack.c.b16 %v725, %v724
    %v741 = vpack.c.b16 %v727, %v726
    %v742 = vpack.c.b16 %v729, %v728
    %v743 = vpack.c.b16 %v731, %v730
    %v744 = vpack.c.b16 %v733, %v732
    %v745 = vpack.c.b16 %v735, %v734
    %v746 = vpack.c.b16 %v737, %v736
    %v747 = vpack.c.b16 %v739, %v738
    %756 = vmatpush.bf16.msra.mxu0 %v747
    %757 = vmatpush.bf16.msra.mxu0 %v746
    %758 = vmatpush.bf16.msra.mxu0 %v745
    %759 = vmatpush.bf16.msra.mxu0 %v744
    %760 = vmatpush.bf16.msra.mxu0 %v743
    %761 = vmatpush.bf16.msra.mxu0 %v742
    %762 = vmatpush.bf16.msra.mxu0 %v741
    %763 = vmatpush.bf16.msra.mxu0 %v740
    %764 = vmatmul.bf16.gmra.mxu0 %v689
    %v765 = vpop.f32.mrf.mxu0
    %v766 = vadd.f32 %v707, %v765
    %v767 = vpop.f32.mrf.mxu0
    %768 = vdwg.mxu0
    %v769 = vtanh.pop %v766
    %770 = vst [vmem:[#allocation14] sm:$0x3] %v769
    // Predicated region
    $region58: #{tpu_custom_call.1} parent=1 // pred_check
      _
    $region59: #{tpu_custom_call.1} parent=1 // pred_check_branch
      %772 = sbr.rel (0) target = $region61
    $region60: #{tpu_custom_call.1} parent=1 // pred_region
      %774 = vsyncadd [#allocation4], 0
      %s776 = sshll.u32 [#allocation14], 4
      %s777 = int_to_ptr.vmem [resolvable:$true] %s776
      %s778 = sshll.u32 %s7, 4
      %s779 = int_to_ptr.hbm [resolvable:$true] %s778
      %781 = dma.vmem_to_hbm [thread:$0]  %s777, 32, %s779, [#allocation4]
    $region61: #{tpu_custom_call.1} parent=1 // pred_fallthru
      _
    // Predicated region
    $region62: #{tpu_custom_call.1} parent=1 // pred_check
      _
    $region63: #{tpu_custom_call.1} parent=1 // pred_check_branch
      %783 = sbr.rel (0) target = $region65
    $region64: #{tpu_custom_call.1} parent=1 // pred_region
      %785 = dma.done [#allocation4], 32
    $region65: #{tpu_custom_call.1} parent=1 // pred_fallthru
      _
    %786 = vsyncpa [#allocation3], 1
    %787 = vsyncpa [#allocation6], 1
    %788 = vsyncpa [#allocation9], 1
    %789 = vsyncpa [#allocation12], 1
    %790 = vsyncpa [#allocation4], 1

</llo_original>
